<compile_context>
chip_gen: v7x
topology: tpu7x:2x2x1
jax: 0.10.0
libtpu: 0.0.40
codegen_flags: <defaults>
</compile_context>

<pallas_src>
import jax
import jax.numpy as jnp
from jax.experimental import pallas as pl
from jax.experimental.pallas import tpu as pltpu


def nsp_kernel(x_ref, w_ref, b_ref, o_ref):
    x = x_ref[...].astype(jnp.float32)                   # [TM, H]  (streamed tile)
    w = w_ref[...].astype(jnp.float32)                   # [2, H]   (resident, PyTorch layout)
    # VPU elementwise multiply + XLU cross-lane reduce per class; no MXU involved.
    y0 = jnp.sum(x * w[0:1, :], axis=1, keepdims=True)   # [TM, 1]
    y1 = jnp.sum(x * w[1:2, :], axis=1, keepdims=True)   # [TM, 1]
    b0 = b_ref[0].astype(jnp.float32)                    # scalars from SMEM
    b1 = b_ref[1].astype(jnp.float32)
    out = jnp.concatenate([y0 + b0, y1 + b1], axis=1)    # [TM, 2]
    o_ref[...] = out.astype(o_ref.dtype)


def _round_up(x, m):
    return ((x + m - 1) // m) * m


# Sublane packing multiple per element size (f32 -> 8, bf16 -> 16, int8 -> 32).
_SUBLANE = {4: 8, 2: 16, 1: 32}


def _choose_tm(B, H, itemsize, target_tile_bytes=8 * 1024 * 1024):
    """Batch-tile rows: multiple of the dtype's sublane packing, sized so one
    LANE-PADDED X tile is <= ~8 MiB, and capped so the grid has >= 4 steps
    whenever B is large enough (v7x dual-TC utilization + pipelining)."""
    sub = _SUBLANE.get(itemsize, 8)
    padded_h = _round_up(H, 128)
    rows = max(sub, target_tile_bytes // max(1, padded_h * itemsize))
    rows = min(rows, max(sub, _round_up(pl.cdiv(B, 4), sub)))
    tm = max(sub, (min(rows, max(B, sub)) // sub) * sub)
    return tm, padded_h


def _x_block_spec(tm, H, grid_steps):
    index_map = lambda i: (i, 0)
    if grid_steps >= 3:
        # 3-deep buffering hides DMA issue gaps once compute is VPU-cheap.
        try:
            return pl.BlockSpec((tm, H), index_map, pipeline_mode=pl.Buffered(3))
        except TypeError:
            pass  # older jax without pipeline_mode kwarg: fall back to default 2-deep
    return pl.BlockSpec((tm, H), index_map)


def next_sentence_pred(x, weight, bias):
    """x: [B, H]; weight: [2, H] (PyTorch nn.Linear convention); bias: [2]."""
    B, H = x.shape
    itemsize = jnp.dtype(x.dtype).itemsize
    tm, padded_h = _choose_tm(B, H, itemsize)
    grid_steps = pl.cdiv(B, tm)

    # VMEM budget from lane/sublane-PADDED shapes.
    n_x_buf = 3 if grid_steps >= 3 else 2
    x_tile_bytes = tm * padded_h * itemsize
    out_tile_bytes = tm * 128 * itemsize                                  # (tm, 2) lane-padded
    w_bytes = 8 * padded_h * jnp.dtype(weight.dtype).itemsize             # (2, H) sublane/lane-padded
    vmem_limit = min(
        48 * 1024 * 1024,
        max(16 * 1024 * 1024,
            n_x_buf * x_tile_bytes + 2 * out_tile_bytes + 2 * w_bytes + 2 * 1024 * 1024))

    return pl.pallas_call(
        nsp_kernel,
        out_shape=jax.ShapeDtypeStruct((B, 2), x.dtype),
        grid_spec=pltpu.PrefetchScalarGridSpec(
            num_scalar_prefetch=0,
            grid=(grid_steps,),
            in_specs=[
                _x_block_spec(tm, H, grid_steps),                          # streamed X tiles
                pl.BlockSpec((2, H), lambda i: (0, 0)),                    # resident weight
                pl.BlockSpec(memory_space=pltpu.MemorySpace.SMEM),         # bias as scalars
            ],
            out_specs=pl.BlockSpec((tm, 2), lambda i: (i, 0)),
        ),
        compiler_params=pltpu.CompilerParams(
            dimension_semantics=("parallel",),
            vmem_limit_bytes=int(vmem_limit)),
    )(x, weight, bias)


if __name__ == "__main__":
    key = jax.random.PRNGKey(0)
    kx, kw, kb, kx2 = jax.random.split(key, 4)

    batch, num_inputs = 8, 32

    # Deterministic synthetic parameters (same shapes as nn.Linear(num_inputs, 2)).
    bound = 1.0 / (num_inputs ** 0.5)
    weight = jax.random.uniform(kw, (2, num_inputs), jnp.float32, -bound, bound)
    bias = jax.random.uniform(kb, (2,), jnp.float32, -bound, bound)
    x = jax.random.normal(kx, (batch, num_inputs), jnp.float32)

    out = next_sentence_pred(x, weight, bias)
    jax.block_until_ready(out)
    ref = x @ weight.T + bias
    assert out.shape == (batch, 2)
    assert jnp.allclose(out, ref, atol=1e-5, rtol=1e-5)

    # Ragged-batch check (B not a multiple of the 8-row tile; grid of 3 steps also
    # exercises the 3-deep buffered X pipeline).
    batch2 = 20
    x2 = jax.random.normal(kx2, (batch2, num_inputs), jnp.float32)
    out2 = next_sentence_pred(x2, weight, bias)
    jax.block_until_ready(out2)
    ref2 = x2 @ weight.T + bias
    assert out2.shape == (batch2, 2)
    assert jnp.allclose(out2, ref2, atol=1e-5, rtol=1e-5)

    print("KERNEL_OK")
</pallas_src>

<mosaic_0001>
module attributes {stable_mosaic.version = 11 : i64} {
  func.func @nsp_kernel(%arg0: i32, %arg1: memref<8x32xf32, #tpu.memory_space<vmem>>, %arg2: memref<2x32xf32, #tpu.memory_space<vmem>>, %arg3: memref<2xf32, #tpu.memory_space<smem>>, %arg4: memref<8x2xf32, #tpu.memory_space<vmem>>) attributes {dimension_semantics = [#tpu.dimension_semantics<parallel>], iteration_bounds = array<i64: 1>, scalar_prefetch = 0 : i64, scratch_operands = 0 : i64, tpu.core_type = #tpu.core_type<tc>, window_params = [{transform_indices = @transform_0, window_bounds = array<i64: 8, 32>}, {pipeline_mode = #tpu.pipeline_mode<synchronous>, transform_indices = @transform_1, window_bounds = array<i64: 2, 32>}, {transform_indices = @transform_2, window_bounds = array<i64: 2>}, {transform_indices = @transform_3, window_bounds = array<i64: 8, 2>}]} {
    %c0 = arith.constant 0 : index
    %c0_0 = arith.constant 0 : index
    %0 = vector.load %arg1[%c0, %c0_0] : memref<8x32xf32, #tpu.memory_space<vmem>>, vector<8x32xf32>
    %c0_1 = arith.constant 0 : index
    %c0_2 = arith.constant 0 : index
    %1 = vector.load %arg2[%c0_1, %c0_2] : memref<2x32xf32, #tpu.memory_space<vmem>>, vector<2x32xf32>
    %2 = vector.extract_strided_slice %1 {offsets = [0, 0], sizes = [1, 32], strides = [1, 1]} : vector<2x32xf32> to vector<1x32xf32>
    %3 = vector.broadcast %2 : vector<1x32xf32> to vector<8x32xf32>
    %4 = arith.mulf %0, %3 : vector<8x32xf32>
    %cst = arith.constant dense<0.000000e+00> : vector<8xf32>
    %5 = vector.multi_reduction <add>, %4, %cst [1] : vector<8x32xf32> to vector<8xf32>
    %6 = vector.shape_cast %5 : vector<8xf32> to vector<8x1xf32>
    %7 = vector.extract_strided_slice %1 {offsets = [1, 0], sizes = [1, 32], strides = [1, 1]} : vector<2x32xf32> to vector<1x32xf32>
    %8 = vector.broadcast %7 : vector<1x32xf32> to vector<8x32xf32>
    %9 = arith.mulf %0, %8 : vector<8x32xf32>
    %cst_3 = arith.constant dense<0.000000e+00> : vector<8xf32>
    %10 = vector.multi_reduction <add>, %9, %cst_3 [1] : vector<8x32xf32> to vector<8xf32>
    %11 = vector.shape_cast %10 : vector<8xf32> to vector<8x1xf32>
    %c0_4 = arith.constant 0 : index
    %12 = memref.load %arg3[%c0_4] : memref<2xf32, #tpu.memory_space<smem>>
    %c1 = arith.constant 1 : index
    %13 = memref.load %arg3[%c1] : memref<2xf32, #tpu.memory_space<smem>>
    %14 = vector.broadcast %12 : f32 to vector<8x1xf32>
    %15 = arith.addf %6, %14 : vector<8x1xf32>
    %16 = vector.broadcast %13 : f32 to vector<8x1xf32>
    %17 = arith.addf %11, %16 : vector<8x1xf32>
    %18 = tpu.concatenate %15, %17 in 1 : vector<8x1xf32>, vector<8x1xf32> -> vector<8x2xf32>
    %c0_5 = arith.constant 0 : index
    %c0_6 = arith.constant 0 : index
    %19 = vector.load %arg4[%c0_5, %c0_6] : memref<8x2xf32, #tpu.memory_space<vmem>>, vector<8x2xf32>
    tpu.vector_store %arg4[%c0_5, %c0_6], %18 {strides = array<i32>} : memref<8x2xf32, #tpu.memory_space<vmem>>, vector<8x2xf32>,
    return
  }
  func.func @transform_0(%arg0: i32) -> (i32, i32) {
    %c0_i32 = arith.constant 0 : i32
    %c0_i32_0 = arith.constant 0 : i32
    return %arg0, %c0_i32 : i32, i32
  }
  func.func @transform_1(%arg0: i32) -> (i32, i32) {
    %c0_i32 = arith.constant 0 : i32
    %c0_i32_0 = arith.constant 0 : i32
    %c0_i32_1 = arith.constant 0 : i32
    return %c0_i32, %c0_i32_0 : i32, i32
  }
  func.func @transform_2(%arg0: i32) -> i32 {
    %c0_i32 = arith.constant 0 : i32
    %c0_i32_0 = arith.constant 0 : i32
    return %c0_i32 : i32
  }
  func.func @transform_3(%arg0: i32) -> (i32, i32) {
    %c0_i32 = arith.constant 0 : i32
    %c0_i32_0 = arith.constant 0 : i32
    return %arg0, %c0_i32 : i32, i32
  }
}

</mosaic_0001>

<llo_original>
// kernel: tpu_custom_call.1
$region0: #{tpu_custom_call.1}
  #allocation0 [shape = 'u32[]', space=smem, size = 0x4, offset = 0x4, fixed_abs, tag = 'smem constant byte address 0x4 - core index']
  #allocation1 [shape = 'u32[144,128]{1,0:T(1,128)}', space=vmem, size = 0x12000, scoped, tag = 'internal scratch']
  %s0 = inlined_call_operand.hbm [shape: f32[8,32], index: 0, kind: input, shape index: {}]
  %s1 = inlined_call_operand.vmem [shape: f32[2,32], index: 1, kind: input, shape index: {}]
  %s2 = inlined_call_operand.vmem [shape: f32[2], index: 2, kind: input, shape index: {}]
  %s3 = inlined_call_operand.vmem [shape: f32[8,2], index: 3, kind: output, shape index: {}]
  %s4 = sld [smem:[#allocation0]]
  $region30: #{tpu_custom_call.1} parent=0
    _
  %s6 = ssub.s32 1, %s4
  %s7 = scalar_select 0, %s6, %s4
  $region1: #{tpu_custom_call.1} parent=0
    #allocation2 [shape = 'u8[4096]{0}', space=vmem, size = 0x1000, scoped, tag = 'input window, operand 0, single buffered']
    #allocation3 [shape = 's32[1]{0}', space=sflag, size = 0x4, scoped, tag = 'scoped memory for tpu_custom_call.1']
    #allocation4 [shape = 's32[1]{0}', space=sflag, size = 0x4, scoped, tag = 'scoped memory for tpu_custom_call.1']
    #allocation5 [shape = 'u8[512]{0}', space=smem, size = 0x200, scoped, tag = 'input window, operand 2, single buffered']
    %8 = vsyncpa [#allocation3], 0
    %9 = vsyncpa [#allocation4], 0
    // Predicated region
    $region2: #{tpu_custom_call.1} parent=1 // pred_check
      _
    $region3: #{tpu_custom_call.1} parent=1 // pred_check_branch
      %11 = sbr.rel (0) target = $region5
    $region4: #{tpu_custom_call.1} parent=1 // pred_region
      %s13 = ssub.s32 128, 128
      %14 = vsyncadd [#allocation3], %s13
      %s16 = sshll.u32 [#allocation2], 4
      %s17 = int_to_ptr.vmem [resolvable:$true] %s16
      %19 = dma.hbm_to_vmem [thread:$0]  %s0, 128, %s17, [#allocation3]
    $region5: #{tpu_custom_call.1} parent=1 // pred_fallthru
      _
    // Predicated region
    $region6: #{tpu_custom_call.1} parent=1 // pred_check
      _
    $region7: #{tpu_custom_call.1} parent=1 // pred_check_branch
      %21 = sbr.rel (0) target = $region9
    $region8: #{tpu_custom_call.1} parent=1 // pred_region
      _
    $region9: #{tpu_custom_call.1} parent=1 // pred_fallthru
      _
    // Predicated region
    $region10: #{tpu_custom_call.1} parent=1 // pred_check
      _
    $region11: #{tpu_custom_call.1} parent=1 // pred_check_branch
      %23 = sbr.rel (0) target = $region13
    $region12: #{tpu_custom_call.1} parent=1 // pred_region
      %s25 = ssub.s32 16, 16
      %26 = vsyncadd [#allocation4], %s25
      %s28 = sshll.u32 %s2, 4
      %s29 = int_to_ptr.vmem [resolvable:$true] %s28
      %31 = dma.vmem_to_smem %s29, 16, [#allocation5], [#allocation4]
    $region13: #{tpu_custom_call.1} parent=1 // pred_fallthru
      _
    // Predicated region
    $region14: #{tpu_custom_call.1} parent=1 // pred_check
      _
    $region15: #{tpu_custom_call.1} parent=1 // pred_check_branch
      %33 = sbr.rel (0) target = $region17
    $region16: #{tpu_custom_call.1} parent=1 // pred_region
      %34 = dma.done [#allocation3], 128
    $region17: #{tpu_custom_call.1} parent=1 // pred_fallthru
      _
    // Predicated region
    $region18: #{tpu_custom_call.1} parent=1 // pred_check
      _
    $region19: #{tpu_custom_call.1} parent=1 // pred_check_branch
      %36 = sbr.rel (0) target = $region21
    $region20: #{tpu_custom_call.1} parent=1 // pred_region
      %37 = dma.done [#allocation4], 16
    $region21: #{tpu_custom_call.1} parent=1 // pred_fallthru
      _
    %38 = sfence
    %v39 = vld [vmem:[#allocation2] sm:$0xff]
    %v40 = vld [vmem:[%s1] sm:$0x3]
    %v41 = vlaneseq
    %v42 = vshrl.u32 %v41, 7
    %v43 = vsub.s32 0, %v42
    %v44 = vrot.slane %v40, %v43
    %v45 = vmul.f32 %v39, %v44
    %vm46 = vcmask 261120
    %v47 = vsel %vm46, %v45, 0.0
    %48 = vadd.xlane.f32.xlu0 %v47
    %v49 = vpop.xlane.xlu0 %48
    %v50 = vlaneseq
    %v51 = vshrl.u32 %v50, 7
    %v52 = vsub.s32 1, %v51
    %v53 = vrot.slane %v40, %v52
    %v54 = vmul.f32 %v39, %v53
    %v55 = vsel %vm46, %v54, 0.0
    %56 = vadd.xlane.f32.xlu0 %v55
    %v57 = vpop.xlane.xlu0 %56
    %s58 = sld [smem:[#allocation5]]
    %s59 = sld [smem:[#allocation5 + $0x1]]
    %v60 = vstv %s58
    %v61 = vadd.f32 %v49, %v60
    %v62 = vstv %s59
    %v63 = vadd.f32 %v57, %v62
    %vm64 = vcmask 7168
    %v65 = vsel %vm64, %v61, %v63
    %vm66 = vcmask 15360
    %67 = vst.msk [vmem:[%s3] sm:$0xff] %vm66, %v65
    // Predicated region
    $region22: #{tpu_custom_call.1} parent=1 // pred_check
      _
    $region23: #{tpu_custom_call.1} parent=1 // pred_check_branch
      %69 = sbr.rel (0) target = $region25
    $region24: #{tpu_custom_call.1} parent=1 // pred_region
      _
    $region25: #{tpu_custom_call.1} parent=1 // pred_fallthru
      _
    // Predicated region
    $region26: #{tpu_custom_call.1} parent=1 // pred_check
      _
    $region27: #{tpu_custom_call.1} parent=1 // pred_check_branch
      %71 = sbr.rel (0) target = $region29
    $region28: #{tpu_custom_call.1} parent=1 // pred_region
      _
    $region29: #{tpu_custom_call.1} parent=1 // pred_fallthru
      _
    %72 = vsyncpa [#allocation3], 1
    %73 = vsyncpa [#allocation4], 1

</llo_original>
